<compile_context>
chip_gen: v6e
topology: v6e:2x2x1
jax: 0.10.0
libtpu: 0.0.40
codegen_flags: <defaults>
</compile_context>

<pallas_src>
import functools

import jax
import jax.numpy as jnp
import numpy as np
from jax.experimental import pallas as pl
from jax.experimental.pallas import tpu as pltpu

EPS = 1e-5


# --------------------------------------------------------------------------
# Pallas kernel: 4-tap conv-as-matmul (bf16 MXU) + bias + LayerNorm epilogue
# --------------------------------------------------------------------------
def _merge_kernel(n_real, t0_ref, t1_ref, w_ref, p_ref, o_ref):
    # t0/t1: (TM, 4C) bf16 rows of the space-to-depth image (dh = 0 / 1).
    # w_ref: (4, 4C, Npad) bf16 sub-kernels [W00, W01, W10, W11] over (dh, dw).
    # p_ref: (3, Npad) f32 rows = [conv bias, LN gamma, LN beta] (zero padded).
    # o_ref: (TM, Npad) f32.
    x0 = t0_ref[...]
    x1 = t1_ref[...]

    # dw == 0 taps.
    a = jnp.dot(x0, w_ref[0], preferred_element_type=jnp.float32)
    a = a + jnp.dot(x1, w_ref[2], preferred_element_type=jnp.float32)
    # dw == 1 taps need row m+1: compute unshifted, then roll the f32 partial
    # result up by one row.  The wrapped last row only affects the throw-away
    # (j == Wo) output rows, which the wrapper slices off.
    b = jnp.dot(x0, w_ref[1], preferred_element_type=jnp.float32)
    b = b + jnp.dot(x1, w_ref[3], preferred_element_type=jnp.float32)

    tm = a.shape[0]
    y = a + pltpu.roll(b, shift=tm - 1, axis=0) + p_ref[0:1, :]   # + conv bias

    # LayerNorm over the n_real true channels.  Padded lanes are exactly 0
    # (zero weights / bias) and have gamma == beta == 0, so they contribute
    # nothing to the sums and stay 0 in the output.
    inv_n = 1.0 / float(n_real)
    mu = jnp.sum(y, axis=-1, keepdims=True) * inv_n
    ms = jnp.sum(y * y, axis=-1, keepdims=True) * inv_n
    s = jax.lax.rsqrt(ms - mu * mu + EPS) * p_ref[1:2, :]          # rsqrt*gamma
    o_ref[...] = (y * s + (p_ref[2:3, :] - mu * s)).astype(o_ref.dtype)


# --------------------------------------------------------------------------
# Tiling helper: TM = k*(Wo+1), k | B*Ho, multiple of 8, <= max_rows, grid >= 2
# --------------------------------------------------------------------------
def _pick_tm(bh_rows, wstride, max_rows=1024):
    total = bh_rows * wstride
    cands = []
    for k in range(1, bh_rows + 1):
        if bh_rows % k:
            continue
        tm = k * wstride
        if tm <= max_rows and tm % 8 == 0:
            cands.append(tm)
    pref = [t for t in cands if total // t >= 2]
    if pref:
        return max(pref)
    if cands:
        return max(cands)
    return total          # single full-extent block (always a legal shape)


# --------------------------------------------------------------------------
# Wrapper
# --------------------------------------------------------------------------
def conv_patch_merging(x, H, W, conv_w, conv_b, gamma, beta):
    """x: (B, L, C); conv_w: (2C, C, 3, 3) torch OIHW.  Returns (B, Ho*Wo, 2C)."""
    B, L, C = x.shape
    assert L == H * W, "input feature has wrong size"
    n_out = 2 * C

    # ---- JAX-side layout prep (~2x raw-input traffic; no 9x im2col) --------
    xh = x.reshape(B, H, W, C)
    xh = jnp.pad(xh, ((0, 0), (0, H % 2), (0, W % 2), (0, 0)))    # pad to even
    Hp, Wp = xh.shape[1], xh.shape[2]
    Ho, Wo = Hp // 2, Wp // 2
    P = jnp.pad(xh, ((0, 0), (1, 1), (1, 1), (0, 0)))             # conv pad = 1
    # space-to-depth: S[b, i, j, (sh, sw, c)] = P[b, 2i+sh, 2j+sw, c]
    S = P.reshape(B, Ho + 1, 2, Wo + 1, 2, C)
    S = S.transpose(0, 1, 3, 2, 4, 5).reshape(B, Ho + 1, Wo + 1, 4 * C)
    S = S.astype(jnp.bfloat16)
    wstride = Wo + 1
    rows = B * Ho * wstride
    t0 = S[:, :Ho].reshape(rows, 4 * C)     # dh = 0 rows
    t1 = S[:, 1:].reshape(rows, 4 * C)      # dh = 1 rows

    # ---- weights: (dh, dw) sub-kernels of the 3x3 conv ---------------------
    n_pad = n_out if n_out >= 128 else 128               # lane-dense output
    wt = jnp.transpose(conv_w, (2, 3, 1, 0))             # (kh, kw, C, O)
    wt = jnp.pad(wt, ((0, 1), (0, 1), (0, 0), (0, 0)))   # kh,kw -> 4 (zero taps)
    wt = wt.reshape(2, 2, 2, 2, C, n_out)                # (dh, sh, dw, sw, C, O)
    wt = wt.transpose(0, 2, 1, 3, 4, 5).reshape(4, 4 * C, n_out)
    wt = jnp.pad(wt, ((0, 0), (0, 0), (0, n_pad - n_out))).astype(jnp.bfloat16)

    params = jnp.zeros((3, n_pad), jnp.float32)
    params = params.at[0, :n_out].set(conv_b.astype(jnp.float32))
    params = params.at[1, :n_out].set(gamma.astype(jnp.float32))
    params = params.at[2, :n_out].set(beta.astype(jnp.float32))

    # ---- tiling / VMEM budget ----------------------------------------------
    tm = _pick_tm(B * Ho, wstride)
    k4 = 4 * C
    est = (2 * 2 * tm * k4 * 2          # T0/T1, double-buffered, bf16
           + 4 * k4 * n_pad * 2         # weights, single-buffered, bf16
           + 3 * n_pad * 4              # params
           + 2 * tm * n_pad * 4)        # output, double-buffered, f32
    vmem_limit = int(min(48 * 2**20, max(16 * 2**20, 6 * est)))
    # TODO(synk): for very large C (>=512) add an 'arbitrary' reduction grid
    # axis over K=4C (+ optional N tiling) with a VMEM accumulator instead of
    # a full-K resident weight block.

    out_flat = pl.pallas_call(
        functools.partial(_merge_kernel, n_out),
        out_shape=jax.ShapeDtypeStruct((rows, n_pad), jnp.float32),
        grid_spec=pltpu.PrefetchScalarGridSpec(
            num_scalar_prefetch=0,
            grid=(rows // tm,),
            in_specs=[
                pl.BlockSpec((tm, k4), lambda i: (i, 0)),
                pl.BlockSpec((tm, k4), lambda i: (i, 0)),
                pl.BlockSpec((4, k4, n_pad), lambda i: (0, 0, 0),
                             pipeline_mode=pl.Buffered(1)),
                pl.BlockSpec((3, n_pad), lambda i: (0, 0),
                             pipeline_mode=pl.Buffered(1)),
            ],
            out_specs=pl.BlockSpec((tm, n_pad), lambda i: (i, 0)),
        ),
        compiler_params=pltpu.CompilerParams(
            dimension_semantics=("parallel",),
            vmem_limit_bytes=vmem_limit),
    )(t0, t1, wt, params)

    # Drop the throw-away j == Wo rows and the lane padding.
    out = out_flat.reshape(B, Ho, wstride, n_pad)[:, :, :Wo, :n_out]
    return out.reshape(B, Ho * Wo, n_out)


# --------------------------------------------------------------------------
# Pure-JAX reference (lax conv + LayerNorm) for correctness check
# --------------------------------------------------------------------------
def reference(x, H, W, conv_w, conv_b, gamma, beta):
    B, L, C = x.shape
    xh = x.reshape(B, H, W, C)
    xh = jnp.pad(xh, ((0, 0), (0, H % 2), (0, W % 2), (0, 0)))
    x_nchw = jnp.transpose(xh, (0, 3, 1, 2))
    y = jax.lax.conv_general_dilated(
        x_nchw, conv_w, window_strides=(2, 2), padding=((1, 1), (1, 1)),
        dimension_numbers=("NCHW", "OIHW", "NCHW"))
    y = y + conv_b[None, :, None, None]
    Bc, C2, Ho, Wo = y.shape
    y = y.reshape(Bc, C2, Ho * Wo).transpose(0, 2, 1)    # (B, L', 2C)
    mu = y.mean(-1, keepdims=True)
    var = ((y - mu) ** 2).mean(-1, keepdims=True)
    return (y - mu) / jnp.sqrt(var + EPS) * gamma + beta


# --------------------------------------------------------------------------
if __name__ == "__main__":
    key = jax.random.PRNGKey(0)
    k_x, k_w, k_b, k_g, k_bt = jax.random.split(key, 5)

    B, H, W, C = 2, 16, 16, 4           # dim = 4, L = 256
    L = H * W

    x = jax.random.normal(k_x, (B, L, C), dtype=jnp.float32)
    conv_w = 0.1 * jax.random.normal(k_w, (2 * C, C, 3, 3), dtype=jnp.float32)
    conv_b = 0.1 * jax.random.normal(k_b, (2 * C,), dtype=jnp.float32)
    gamma = 1.0 + 0.1 * jax.random.normal(k_g, (2 * C,), dtype=jnp.float32)
    beta = 0.1 * jax.random.normal(k_bt, (2 * C,), dtype=jnp.float32)

    out = jax.block_until_ready(
        conv_patch_merging(x, H, W, conv_w, conv_b, gamma, beta))
    ref = jax.block_until_ready(reference(x, H, W, conv_w, conv_b, gamma, beta))

    assert out.shape == (B, (H // 2) * (W // 2), 2 * C), out.shape
    # bf16 MXU inputs (f32 accumulate / f32 LayerNorm) -> slightly looser tol.
    np.testing.assert_allclose(np.asarray(out), np.asarray(ref),
                               rtol=2e-2, atol=2e-2)
    print("KERNEL_OK")
</pallas_src>

<mosaic_0001>
module attributes {stable_mosaic.version = 11 : i64} {
  func.func @_merge_kernel(%arg0: i32, %arg1: memref<72x16xbf16, #tpu.memory_space<vmem>>, %arg2: memref<72x16xbf16, #tpu.memory_space<vmem>>, %arg3: memref<4x16x128xbf16, #tpu.memory_space<vmem>>, %arg4: memref<3x128xf32, #tpu.memory_space<vmem>>, %arg5: memref<72x128xf32, #tpu.memory_space<vmem>>) attributes {dimension_semantics = [#tpu.dimension_semantics<parallel>], iteration_bounds = array<i64: 2>, scalar_prefetch = 0 : i64, scratch_operands = 0 : i64, tpu.core_type = #tpu.core_type<tc>, window_params = [{transform_indices = @transform_0, window_bounds = array<i64: 72, 16>}, {transform_indices = @transform_1, window_bounds = array<i64: 72, 16>}, {pipeline_mode = #tpu.pipeline_mode<synchronous>, transform_indices = @transform_2, window_bounds = array<i64: 4, 16, 128>}, {pipeline_mode = #tpu.pipeline_mode<synchronous>, transform_indices = @transform_3, window_bounds = array<i64: 3, 128>}, {transform_indices = @transform_4, window_bounds = array<i64: 72, 128>}]} {
    %c0 = arith.constant 0 : index
    %c0_0 = arith.constant 0 : index
    %0 = vector.load %arg1[%c0, %c0_0] : memref<72x16xbf16, #tpu.memory_space<vmem>>, vector<72x16xbf16>
    %c0_1 = arith.constant 0 : index
    %c0_2 = arith.constant 0 : index
    %1 = vector.load %arg2[%c0_1, %c0_2] : memref<72x16xbf16, #tpu.memory_space<vmem>>, vector<72x16xbf16>
    %c0_3 = arith.constant 0 : index
    %c0_4 = arith.constant 0 : index
    %c0_5 = arith.constant 0 : index
    %2 = vector.load %arg3[%c0_3, %c0_4, %c0_5] : memref<4x16x128xbf16, #tpu.memory_space<vmem>>, vector<1x16x128xbf16>
    %3 = vector.shape_cast %2 : vector<1x16x128xbf16> to vector<16x128xbf16>
    %cst = arith.constant dense<0.000000e+00> : vector<72x128xf32>
    %4 = tpu.matmul %0, %3, %cst {dimension_numbers = #tpu.dot_dimension_numbers<[1], [0], [0], [1], [0, 0, 1, 1], [], []>} : vector<72x16xbf16>, vector<16x128xbf16>, vector<72x128xf32> -> vector<72x128xf32>
    %c2 = arith.constant 2 : index
    %c0_6 = arith.constant 0 : index
    %c0_7 = arith.constant 0 : index
    %5 = vector.load %arg3[%c2, %c0_6, %c0_7] : memref<4x16x128xbf16, #tpu.memory_space<vmem>>, vector<1x16x128xbf16>
    %6 = vector.shape_cast %5 : vector<1x16x128xbf16> to vector<16x128xbf16>
    %cst_8 = arith.constant dense<0.000000e+00> : vector<72x128xf32>
    %7 = tpu.matmul %1, %6, %cst_8 {dimension_numbers = #tpu.dot_dimension_numbers<[1], [0], [0], [1], [0, 0, 1, 1], [], []>} : vector<72x16xbf16>, vector<16x128xbf16>, vector<72x128xf32> -> vector<72x128xf32>
    %8 = arith.addf %4, %7 : vector<72x128xf32>
    %c1 = arith.constant 1 : index
    %c0_9 = arith.constant 0 : index
    %c0_10 = arith.constant 0 : index
    %9 = vector.load %arg3[%c1, %c0_9, %c0_10] : memref<4x16x128xbf16, #tpu.memory_space<vmem>>, vector<1x16x128xbf16>
    %10 = vector.shape_cast %9 : vector<1x16x128xbf16> to vector<16x128xbf16>
    %cst_11 = arith.constant dense<0.000000e+00> : vector<72x128xf32>
    %11 = tpu.matmul %0, %10, %cst_11 {dimension_numbers = #tpu.dot_dimension_numbers<[1], [0], [0], [1], [0, 0, 1, 1], [], []>} : vector<72x16xbf16>, vector<16x128xbf16>, vector<72x128xf32> -> vector<72x128xf32>
    %c3 = arith.constant 3 : index
    %c0_12 = arith.constant 0 : index
    %c0_13 = arith.constant 0 : index
    %12 = vector.load %arg3[%c3, %c0_12, %c0_13] : memref<4x16x128xbf16, #tpu.memory_space<vmem>>, vector<1x16x128xbf16>
    %13 = vector.shape_cast %12 : vector<1x16x128xbf16> to vector<16x128xbf16>
    %cst_14 = arith.constant dense<0.000000e+00> : vector<72x128xf32>
    %14 = tpu.matmul %1, %13, %cst_14 {dimension_numbers = #tpu.dot_dimension_numbers<[1], [0], [0], [1], [0, 0, 1, 1], [], []>} : vector<72x16xbf16>, vector<16x128xbf16>, vector<72x128xf32> -> vector<72x128xf32>
    %15 = arith.addf %11, %14 : vector<72x128xf32>
    %c71_i32 = arith.constant 71 : i32
    %16 = tpu.dynamic_rotate %15 by %c71_i32 dim 0 : vector<72x128xf32>, i32 -> vector<72x128xf32>
    %17 = arith.addf %8, %16 : vector<72x128xf32>
    %c0_15 = arith.constant 0 : index
    %c0_16 = arith.constant 0 : index
    %18 = vector.load %arg4[%c0_15, %c0_16] : memref<3x128xf32, #tpu.memory_space<vmem>>, vector<1x128xf32>
    %19 = vector.broadcast %18 : vector<1x128xf32> to vector<72x128xf32>
    %20 = arith.addf %17, %19 : vector<72x128xf32>
    %cst_17 = arith.constant dense<0.000000e+00> : vector<72xf32>
    %21 = vector.multi_reduction <add>, %20, %cst_17 [1] : vector<72x128xf32> to vector<72xf32>
    %22 = vector.shape_cast %21 : vector<72xf32> to vector<72x1xf32>
    %cst_18 = arith.constant 1.250000e-01 : f32
    %23 = vector.broadcast %cst_18 : f32 to vector<72x1xf32>
    %24 = arith.mulf %22, %23 : vector<72x1xf32>
    %25 = arith.mulf %20, %20 : vector<72x128xf32>
    %cst_19 = arith.constant dense<0.000000e+00> : vector<72xf32>
    %26 = vector.multi_reduction <add>, %25, %cst_19 [1] : vector<72x128xf32> to vector<72xf32>
    %27 = vector.shape_cast %26 : vector<72xf32> to vector<72x1xf32>
    %cst_20 = arith.constant 1.250000e-01 : f32
    %28 = vector.broadcast %cst_20 : f32 to vector<72x1xf32>
    %29 = arith.mulf %27, %28 : vector<72x1xf32>
    %30 = arith.mulf %24, %24 : vector<72x1xf32>
    %31 = arith.subf %29, %30 : vector<72x1xf32>
    %cst_21 = arith.constant 9.99999974E-6 : f32
    %32 = vector.broadcast %cst_21 : f32 to vector<72x1xf32>
    %33 = arith.addf %31, %32 : vector<72x1xf32>
    %34 = math.rsqrt %33 : vector<72x1xf32>
    %c1_22 = arith.constant 1 : index
    %c0_23 = arith.constant 0 : index
    %35 = vector.load %arg4[%c1_22, %c0_23] : memref<3x128xf32, #tpu.memory_space<vmem>>, vector<1x128xf32>
    %36 = vector.broadcast %34 : vector<72x1xf32> to vector<72x128xf32>
    %37 = vector.broadcast %35 : vector<1x128xf32> to vector<72x128xf32>
    %38 = arith.mulf %36, %37 : vector<72x128xf32>
    %39 = arith.mulf %20, %38 : vector<72x128xf32>
    %c2_24 = arith.constant 2 : index
    %c0_25 = arith.constant 0 : index
    %40 = vector.load %arg4[%c2_24, %c0_25] : memref<3x128xf32, #tpu.memory_space<vmem>>, vector<1x128xf32>
    %41 = vector.broadcast %24 : vector<72x1xf32> to vector<72x128xf32>
    %42 = arith.mulf %41, %38 : vector<72x128xf32>
    %43 = vector.broadcast %40 : vector<1x128xf32> to vector<72x128xf32>
    %44 = arith.subf %43, %42 : vector<72x128xf32>
    %45 = arith.addf %39, %44 : vector<72x128xf32>
    %c0_26 = arith.constant 0 : index
    %c0_27 = arith.constant 0 : index
    %46 = vector.load %arg5[%c0_26, %c0_27] : memref<72x128xf32, #tpu.memory_space<vmem>>, vector<72x128xf32>
    tpu.vector_store %arg5[%c0_26, %c0_27], %45 {strides = array<i32>} : memref<72x128xf32, #tpu.memory_space<vmem>>, vector<72x128xf32>,
    return
  }
  func.func @transform_0(%arg0: i32) -> (i32, i32) {
    %c0_i32 = arith.constant 0 : i32
    %c0_i32_0 = arith.constant 0 : i32
    return %arg0, %c0_i32 : i32, i32
  }
  func.func @transform_1(%arg0: i32) -> (i32, i32) {
    %c0_i32 = arith.constant 0 : i32
    %c0_i32_0 = arith.constant 0 : i32
    return %arg0, %c0_i32 : i32, i32
  }
  func.func @transform_2(%arg0: i32) -> (i32, i32, i32) {
    %c0_i32 = arith.constant 0 : i32
    %c0_i32_0 = arith.constant 0 : i32
    %c0_i32_1 = arith.constant 0 : i32
    %c0_i32_2 = arith.constant 0 : i32
    return %c0_i32, %c0_i32_0, %c0_i32_1 : i32, i32, i32
  }
  func.func @transform_3(%arg0: i32) -> (i32, i32) {
    %c0_i32 = arith.constant 0 : i32
    %c0_i32_0 = arith.constant 0 : i32
    %c0_i32_1 = arith.constant 0 : i32
    return %c0_i32, %c0_i32_0 : i32, i32
  }
  func.func @transform_4(%arg0: i32) -> (i32, i32) {
    %c0_i32 = arith.constant 0 : i32
    %c0_i32_0 = arith.constant 0 : i32
    return %arg0, %c0_i32 : i32, i32
  }
}

</mosaic_0001>

<llo_original>
// kernel: tpu_custom_call.1
$region0: #{tpu_custom_call.1}
  #allocation0 [shape = 'u32[]', space=smem, size = 0x4, offset = 0x4, fixed_abs, tag = 'smem constant byte address 0x4 - core index']
  #allocation1 [shape = 'u32[144,128]{1,0:T(1,128)}', space=vmem, size = 0x12000, scoped, tag = 'internal scratch']
  %s0 = inlined_call_operand.vmem [shape: bf16[144,16], index: 0, kind: input, shape index: {}]
  %s1 = inlined_call_operand.vmem [shape: bf16[144,16], index: 1, kind: input, shape index: {}]
  %s2 = inlined_call_operand.vmem [shape: bf16[4,16,128], index: 2, kind: input, shape index: {}]
  %s3 = inlined_call_operand.vmem [shape: f32[3,128], index: 3, kind: input, shape index: {}]
  %s4 = inlined_call_operand.hbm [shape: f32[144,128], index: 4, kind: output, shape index: {}]
  %s5 = sld [smem:[#allocation0]]
  $region49: #{tpu_custom_call.1} parent=0
    _
  %s7 = ssub.s32 1, %s5
  %s8 = scalar_select 0, %s7, %s5
  $region1: #{tpu_custom_call.1} parent=0
    #allocation2 [shape = 'u8[73728]{0}', space=vmem, size = 0x12000, scoped, tag = 'output window, operand 0']
    #allocation3 [shape = 's32[2]{0}', space=sflag, size = 0x8, scoped, tag = 'scoped memory for tpu_custom_call.1']
    %9 = vsyncpa [#allocation3], 0
    %s10 = scalar_lea.sflag [#allocation3], 1
    %11 = vsyncpa %s10, 0
    loop: start=0, step=1, limit=4
    $region2: #{tpu_custom_call.1} parent=1 // loop_pre_header
      _
    $region3: #{tpu_custom_call.1} parent=1 // loop_header
      %s13 = sphi 0, %s17
      %p14 = scmp.ge.s32.totalorder %s13, 4
      %s23 = sphi 0, %s25
      %s26 = sphi 0, %s23
      %s27 = sphi 0, %s26
      %s43 = sphi 0, %s27
      %s49 = sphi 0, %s51
      %s52 = sphi 0, %s49
      %s53 = sphi 0, %s52
      %s69 = sphi 0, %s53
      %s73 = sphi 0, %s73
      %s75 = sphi 0, %s73
      %s76 = sphi 0, %s75
      %s90 = sphi 0, %s76
      %s94 = sphi 0, %s94
      %s96 = sphi 0, %s94
      %s97 = sphi 0, %s96
      %s111 = sphi 0, %s97
      %s117 = sphi 0, %s119
      %s120 = sphi 0, %s117
      %s121 = sphi 0, %s120
      %s137 = sphi 0, %s121
    $region4: #{tpu_custom_call.1} parent=1 // loop_header_branch
      %16 = sbr.rel (%p14) target = $region8
    $region5: #{tpu_custom_call.1} parent=1 // loop_body
      %s18 = ssub.s32 %s13, 1
      %s19 = ssub.s32 %s13, 2
      %s20 = sadd.s32 %s13, 1
      %s21 = ssub.s32 %s13, %s20
      %p22 = scmp.eq.s32.totalorder %s21, 0
      %s24 = sadd.s32 %s23, 1
      %s25 = scalar_select %p22, %s23, %s24
      %p28 = pneg %p22
      %p29 = scmp.eq.s32.totalorder %s13, 1
      %p30 = por %p28, %p29
      %p31 = scmp.ne.s32.totalorder %s23, %s26
      %p32 = scmp.eq.s32.totalorder %s13, 0
      %p33 = por %p31, %p32
      %p34 = scmp.ne.s32.totalorder %s23, %s26
      %p35 = scmp.eq.s32.totalorder %s18, 1
      %p36 = por %p34, %p35
      %p37 = scmp.ne.s32.totalorder %s26, %s27
      %p38 = scmp.eq.s32.totalorder %s18, 0
      %p39 = por %p37, %p38
      %p40 = scmp.ne.s32.totalorder %s26, %s27
      %p41 = scmp.eq.s32.totalorder %s19, 1
      %p42 = por %p40, %p41
      %p44 = scmp.ne.s32.totalorder %s27, %s43
      %p45 = scmp.eq.s32.totalorder %s19, 0
      %p46 = por %p44, %p45
      %s47 = ssub.s32 %s13, %s20
      %p48 = scmp.eq.s32.totalorder %s47, 0
      %s50 = sadd.s32 %s49, 1
      %s51 = scalar_select %p48, %s49, %s50
      %p54 = pneg %p48
      %p55 = scmp.eq.s32.totalorder %s13, 1
      %p56 = por %p54, %p55
      %p57 = scmp.ne.s32.totalorder %s49, %s52
      %p58 = scmp.eq.s32.totalorder %s13, 0
      %p59 = por %p57, %p58
      %p60 = scmp.ne.s32.totalorder %s49, %s52
      %p61 = scmp.eq.s32.totalorder %s18, 1
      %p62 = por %p60, %p61
      %p63 = scmp.ne.s32.totalorder %s52, %s53
      %p64 = scmp.eq.s32.totalorder %s18, 0
      %p65 = por %p63, %p64
      %p66 = scmp.ne.s32.totalorder %s52, %s53
      %p67 = scmp.eq.s32.totalorder %s19, 1
      %p68 = por %p66, %p67
      %p70 = scmp.ne.s32.totalorder %s53, %s69
      %p71 = scmp.eq.s32.totalorder %s19, 0
      %p72 = por %p70, %p71
      %s74 = sadd.s32 %s73, 1
      %p77 = scmp.eq.s32.totalorder %s13, 1
      %p78 = scmp.ne.s32.totalorder %s73, %s75
      %p79 = scmp.eq.s32.totalorder %s13, 0
      %p80 = por %p78, %p79
      %p81 = scmp.ne.s32.totalorder %s73, %s75
      %p82 = scmp.eq.s32.totalorder %s18, 1
      %p83 = por %p81, %p82
      %p84 = scmp.ne.s32.totalorder %s75, %s76
      %p85 = scmp.eq.s32.totalorder %s18, 0
      %p86 = por %p84, %p85
      %p87 = scmp.ne.s32.totalorder %s75, %s76
      %p88 = scmp.eq.s32.totalorder %s19, 1
      %p89 = por %p87, %p88
      %p91 = scmp.ne.s32.totalorder %s76, %s90
      %p92 = scmp.eq.s32.totalorder %s19, 0
      %p93 = por %p91, %p92
      %s95 = sadd.s32 %s94, 1
      %p98 = scmp.eq.s32.totalorder %s13, 1
      %p99 = scmp.ne.s32.totalorder %s94, %s96
      %p100 = scmp.eq.s32.totalorder %s13, 0
      %p101 = por %p99, %p100
      %p102 = scmp.ne.s32.totalorder %s94, %s96
      %p103 = scmp.eq.s32.totalorder %s18, 1
      %p104 = por %p102, %p103
      %p105 = scmp.ne.s32.totalorder %s96, %s97
      %p106 = scmp.eq.s32.totalorder %s18, 0
      %p107 = por %p105, %p106
      %p108 = scmp.ne.s32.totalorder %s96, %s97
      %p109 = scmp.eq.s32.totalorder %s19, 1
      %p110 = por %p108, %p109
      %p112 = scmp.ne.s32.totalorder %s97, %s111
      %p113 = scmp.eq.s32.totalorder %s19, 0
      %p114 = por %p112, %p113
      %s115 = ssub.s32 %s13, %s20
      %p116 = scmp.eq.s32.totalorder %s115, 0
      %s118 = sadd.s32 %s117, 1
      %s119 = scalar_select %p116, %s117, %s118
      %p122 = pneg %p116
      %p123 = scmp.eq.s32.totalorder %s13, 1
      %p124 = por %p122, %p123
      %p125 = scmp.ne.s32.totalorder %s117, %s120
      %p126 = scmp.eq.s32.totalorder %s13, 0
      %p127 = por %p125, %p126
      %p128 = scmp.ne.s32.totalorder %s117, %s120
      %p129 = scmp.eq.s32.totalorder %s18, 1
      %p130 = por %p128, %p129
      %p131 = scmp.ne.s32.totalorder %s120, %s121
      %p132 = scmp.eq.s32.totalorder %s18, 0
      %p133 = por %p131, %p132
      %p134 = scmp.ne.s32.totalorder %s120, %s121
      %p135 = scmp.eq.s32.totalorder %s19, 1
      %p136 = por %p134, %p135
      %p138 = scmp.ne.s32.totalorder %s121, %s137
      %p139 = scmp.eq.s32.totalorder %s19, 0
      %p140 = por %p138, %p139
      %p141 = scmp.le.s32.totalorder 1, %s13
      %p142 = scmp.lt.s32.totalorder %s13, 3
      %p143 = pnand %p141, %p142
      %p144 = pneg %p143
      // Predicated region
      $region9: #{tpu_custom_call.1} parent=5 // pred_check
        _
      $region10: #{tpu_custom_call.1} parent=5 // pred_check_branch
        %146 = sbr.rel (%p143) target = $region12
      $region11: #{tpu_custom_call.1} parent=5 // pred_region
        %s147 = ssub.s32 %s13, 1
        // Predicated region
        $region13: #{tpu_custom_call.1} parent=11 // pred_check
          %p148 = pneg %p86
        $region14: #{tpu_custom_call.1} parent=11 // pred_check_branch
          %150 = sbr.rel (%p148) target = $region16
        $region15: #{tpu_custom_call.1} parent=11 // pred_region
          _
        $region16: #{tpu_custom_call.1} parent=11 // pred_fallthru
          _
        // Predicated region
        $region17: #{tpu_custom_call.1} parent=11 // pred_check
          %p151 = pneg %p107
        $region18: #{tpu_custom_call.1} parent=11 // pred_check_branch
          %153 = sbr.rel (%p151) target = $region20
        $region19: #{tpu_custom_call.1} parent=11 // pred_region
          _
        $region20: #{tpu_custom_call.1} parent=11 // pred_fallthru
          _
      $region12: #{tpu_custom_call.1} parent=5 // pred_fallthru
        _
      %p154 = scmp.lt.s32.totalorder %s13, 2
      // Predicated region
      $region21: #{tpu_custom_call.1} parent=5 // pred_check
        %p155 = pneg %p154
      $region22: #{tpu_custom_call.1} parent=5 // pred_check_branch
        %157 = sbr.rel (%p155) target = $region24
      $region23: #{tpu_custom_call.1} parent=5 // pred_region
        // Predicated region
        $region25: #{tpu_custom_call.1} parent=23 // pred_check
          %p158 = pneg %p33
        $region26: #{tpu_custom_call.1} parent=23 // pred_check_branch
          %160 = sbr.rel (%p158) target = $region28
        $region27: #{tpu_custom_call.1} parent=23 // pred_region
          %s161 = smul.u32 9, %s13
          %p162 = scmp.lt.s32.totalorder %s161, 17
          %s163 = scalar_select %p162, %s161, 17
          %s164 = smul.addr %s163, 4
          %s165 = scalar_lea.vmem %s0, %s164
          %s166 = smul.u32 9, %s13
        $region28: #{tpu_custom_call.1} parent=23 // pred_fallthru
          _
        // Predicated region
        $region29: #{tpu_custom_call.1} parent=23 // pred_check
          %p167 = pneg %p59
        $region30: #{tpu_custom_call.1} parent=23 // pred_check_branch
          %169 = sbr.rel (%p167) target = $region32
        $region31: #{tpu_custom_call.1} parent=23 // pred_region
          %s170 = smul.u32 9, %s13
          %p171 = scmp.lt.s32.totalorder %s170, 17
          %s172 = scalar_select %p171, %s170, 17
          %s173 = smul.addr %s172, 4
          %s174 = scalar_lea.vmem %s1, %s173
          %s175 = smul.u32 9, %s13
        $region32: #{tpu_custom_call.1} parent=23 // pred_fallthru
          _
      $region24: #{tpu_custom_call.1} parent=5 // pred_fallthru
        _
      %p176 = scmp.le.s32.totalorder 1, %s13
      %p177 = scmp.lt.s32.totalorder %s13, 3
      %p178 = pnand %p176, %p177
      %p179 = pneg %p178
      // Predicated region
      $region33: #{tpu_custom_call.1} parent=5 // pred_check
        _
      $region34: #{tpu_custom_call.1} parent=5 // pred_check_branch
        %181 = sbr.rel (%p178) target = $region36
      $region35: #{tpu_custom_call.1} parent=5 // pred_region
        %s182 = ssub.s32 %s13, 1
        %s183 = smul.u32 9, %s18
        %p184 = scmp.lt.s32.totalorder %s183, 17
        %s185 = scalar_select %p184, %s183, 17
        %s186 = smul.addr %s185, 4
        %s187 = scalar_lea.vmem %s0, %s186
        %p188 = pneg %p39
        %p189 = pneg %p36
        %s190 = smul.u32 9, %s18
        %p191 = scmp.lt.s32.totalorder %s190, 17
        %s192 = scalar_select %p191, %s190, 17
        %s193 = smul.addr %s192, 4
        %s194 = scalar_lea.vmem %s1, %s193
        %p195 = pneg %p65
        %p196 = pneg %p62
        %p197 = pneg %p86
        %p198 = pneg %p83
        %p199 = pneg %p107
        %p200 = pneg %p104
        %p201 = pneg %p133
        %p202 = pneg %p130
        %s203 = sand.u32 %s120, 1
        %s204 = scalar_lea.sflag [#allocation3], %s203
        %s205 = sand.u32 %s120, 1
        %s206 = smul.addr %s205, 72
        %s207 = scalar_lea.vmem [#allocation2], %s206
        %s208 = smul.u32 9, %s18
        %p209 = scmp.lt.s32.totalorder %s208, 17
        %s210 = scalar_select %p209, %s208, 17
        %s211 = smul.addr %s210, 4
        %s212 = scalar_lea.vmem %s0, %s211
        %s213 = smul.u32 9, %s18
        %s214 = smul.u32 9, %s18
        %p215 = scmp.lt.s32.totalorder %s214, 17
        %s216 = scalar_select %p215, %s214, 17
        %s217 = smul.addr %s216, 4
        %s218 = scalar_lea.vmem %s1, %s217
        %s219 = smul.u32 9, %s18
        %s220 = smul.u32 9, %s18
        %v222 = vld [vmem:[%s212] sm:$0xf]
        %v223 = vld [vmem:[%s212 + $0x4] sm:$0xf]
        %v224 = vld [vmem:[%s212 + $0x8] sm:$0xf]
        %v225 = vld [vmem:[%s212 + $0xc] sm:$0xf]
        %v226 = vld [vmem:[%s212 + $0x10] sm:$0xf]
        %v227 = vld [vmem:[%s212 + $0x14] sm:$0xf]
        %v228 = vld [vmem:[%s212 + $0x18] sm:$0xf]
        %v229 = vld [vmem:[%s212 + $0x1c] sm:$0xf]
        %v230 = vld [vmem:[%s212 + $0x20] sm:$0xf]
        %v231 = vld [vmem:[%s218] sm:$0xf]
        %v232 = vld [vmem:[%s218 + $0x4] sm:$0xf]
        %v233 = vld [vmem:[%s218 + $0x8] sm:$0xf]
        %v234 = vld [vmem:[%s218 + $0xc] sm:$0xf]
        %v235 = vld [vmem:[%s218 + $0x10] sm:$0xf]
        %v236 = vld [vmem:[%s218 + $0x14] sm:$0xf]
        %v237 = vld [vmem:[%s218 + $0x18] sm:$0xf]
        %v238 = vld [vmem:[%s218 + $0x1c] sm:$0xf]
        %v239 = vld [vmem:[%s218 + $0x20] sm:$0xf]
        %v240 = vld [vmem:[%s2] sm:$0xf]
        %v241 = vld [vmem:[%s2 + $0x4] sm:$0xf]
        %s242 = scalar_lea.vmem %s2, 16
        %v243 = vld [vmem:[%s242] sm:$0xf]
        %v244 = vld [vmem:[%s242 + $0x4] sm:$0xf]
        %v254 = vunpack.c.l.b16 %v231
        %v255 = vunpack.c.l.b16 %v232
        %v256 = vunpack.c.l.b16 %v233
        %v257 = vunpack.c.l.b16 %v234
        %v258 = vunpack.c.l.b16 %v235
        %v259 = vunpack.c.l.b16 %v236
        %v260 = vunpack.c.l.b16 %v237
        %v261 = vunpack.c.l.b16 %v238
        %v262 = vunpack.c.l.b16 %v239
        %v263 = vpack.c.b16 %v255, %v254
        %v264 = vpack.c.b16 %v257, %v256
        %v265 = vpack.c.b16 %v259, %v258
        %v266 = vpack.c.b16 %v261, %v260
        %v267 = vpack.c.b16 %v262, %v262
        %v270 = vunpack.c.l.b16 %v243
        %v271 = vunpack.c.l.b16 %v244
        %v272 = vpack.c.b16 %v271, %v270
        %vm274 = vcmask 130048
        %v276 = vsel %vm274, %v263, 0
        %v279 = vsel %vm274, %v264, 0
        %v282 = vsel %vm274, %v265, 0
        %v285 = vsel %vm274, %v266, 0
        %v288 = vsel %vm274, %v267, 0
        %290 = vmatprep.subr.bf16.mxu0 0
        %291 = vmatpush1.bf16.msra.mxu0 0
        %292 = vmatprep.subr.bf16.mxu0 0
        %293 = vmatpush1.bf16.msra.mxu0 0
        %294 = vmatprep.subr.bf16.mxu0 0
        %295 = vmatpush1.bf16.msra.mxu0 0
        %296 = vmatprep.subr.bf16.mxu0 0
        %297 = vmatpush1.bf16.msra.mxu0 0
        %298 = vmatprep.subr.bf16.mxu0 0
        %299 = vmatpush1.bf16.msra.mxu0 0
        %300 = vmatprep.subr.bf16.mxu0 0
        %301 = vmatpush1.bf16.msra.mxu0 0
        %302 = vmatprep.subr.bf16.mxu0 0
        %303 = vmatpush1.bf16.msra.mxu0 0
        %304 = vmatprep.subr.bf16.mxu0 0
        %305 = vmatpush1.bf16.msra.mxu0 %v272
        %306 = vmatprep.subr.bf16.mxu0 0
        %307 = vmatpush2.bf16.msra.mxu0 0
        %308 = vmatprep.subr.bf16.mxu0 0
        %309 = vmatpush2.bf16.msra.mxu0 0
        %310 = vmatprep.subr.bf16.mxu0 0
        %311 = vmatpush2.bf16.msra.mxu0 0
        %312 = vmatprep.subr.bf16.mxu0 0
        %313 = vmatpush2.bf16.msra.mxu0 0
        %314 = vmatprep.subr.bf16.mxu0 0
        %315 = vmatpush2.bf16.msra.mxu0 0
        %316 = vmatprep.subr.bf16.mxu0 0
        %317 = vmatpush2.bf16.msra.mxu0 0
        %318 = vmatprep.subr.bf16.mxu0 0
        %319 = vmatpush2.bf16.msra.mxu0 0
        %320 = vmatprep.subr.bf16.mxu0 0
        %321 = vmatpush2.bf16.msra.mxu0 0
        %322 = vmatprep.mubr.bf16.mxu0 0
        %323 = vmatmul.mubr.bf16.gmra.mxu0 %v276
        %v324 = vpop.f32.mrf.mxu0
        %v325 = vadd.f32 0.0, %v324
        %v326 = vpop.f32.mrf.mxu0
        %v327 = vpop.f32.mrf.mxu0
        %v328 = vadd.f32 0.0, %v327
        %v329 = vpop.f32.mrf.mxu0
        %330 = vmatprep.mubr.bf16.mxu0 0
        %331 = vmatmul.mubr.bf16.gmra.mxu0 %v279
        %v332 = vpop.f32.mrf.mxu0
        %v333 = vadd.f32 0.0, %v332
        %v334 = vpop.f32.mrf.mxu0
        %v335 = vpop.f32.mrf.mxu0
        %v336 = vadd.f32 0.0, %v335
        %v337 = vpop.f32.mrf.mxu0
        %338 = vmatprep.mubr.bf16.mxu0 0
        %339 = vmatmul.mubr.bf16.gmra.mxu0 %v282
        %v340 = vpop.f32.mrf.mxu0
        %v341 = vadd.f32 0.0, %v340
        %v342 = vpop.f32.mrf.mxu0
        %v343 = vpop.f32.mrf.mxu0
        %v344 = vadd.f32 0.0, %v343
        %v345 = vpop.f32.mrf.mxu0
        %346 = vmatprep.mubr.bf16.mxu0 0
        %347 = vmatmul.mubr.bf16.gmra.mxu0 %v285
        %v348 = vpop.f32.mrf.mxu0
        %v349 = vadd.f32 0.0, %v348
        %v350 = vpop.f32.mrf.mxu0
        %v351 = vpop.f32.mrf.mxu0
        %v352 = vadd.f32 0.0, %v351
        %v353 = vpop.f32.mrf.mxu0
        %354 = vmatprep.mubr.bf16.mxu0 0
        %355 = vmatmul.mubr.bf16.gmra.mxu0 %v288
        %v356 = vpop.f32.mrf.mxu0
        %v357 = vadd.f32 0.0, %v356
        %v358 = vpop.f32.mrf.mxu0
        %v359 = vpop.f32.mrf.mxu0
        %v360 = vpop.f32.mrf.mxu0
        %361 = vdwg.mxu0
        %v371 = vunpack.c.l.b16 %v222
        %v372 = vunpack.c.l.b16 %v223
        %v373 = vunpack.c.l.b16 %v224
        %v374 = vunpack.c.l.b16 %v225
        %v375 = vunpack.c.l.b16 %v226
        %v376 = vunpack.c.l.b16 %v227
        %v377 = vunpack.c.l.b16 %v228
        %v378 = vunpack.c.l.b16 %v229
        %v379 = vunpack.c.l.b16 %v230
        %v380 = vpack.c.b16 %v372, %v371
        %v381 = vpack.c.b16 %v374, %v373
        %v382 = vpack.c.b16 %v376, %v375
        %v383 = vpack.c.b16 %v378, %v377
        %v384 = vpack.c.b16 %v379, %v379
        %v387 = vunpack.c.l.b16 %v240
        %v388 = vunpack.c.l.b16 %v241
        %v389 = vpack.c.b16 %v388, %v387
        %v392 = vsel %vm274, %v380, 0
        %v395 = vsel %vm274, %v381, 0
        %v398 = vsel %vm274, %v382, 0
        %v401 = vsel %vm274, %v383, 0
        %v404 = vsel %vm274, %v384, 0
        %406 = vmatprep.subr.bf16.mxu0 0
        %407 = vmatpush1.bf16.msra.mxu0 0
        %408 = vmatprep.subr.bf16.mxu0 0
        %409 = vmatpush1.bf16.msra.mxu0 0
        %410 = vmatprep.subr.bf16.mxu0 0
        %411 = vmatpush1.bf16.msra.mxu0 0
        %412 = vmatprep.subr.bf16.mxu0 0
        %413 = vmatpush1.bf16.msra.mxu0 0
        %414 = vmatprep.subr.bf16.mxu0 0
        %415 = vmatpush1.bf16.msra.mxu0 0
        %416 = vmatprep.subr.bf16.mxu0 0
        %417 = vmatpush1.bf16.msra.mxu0 0
        %418 = vmatprep.subr.bf16.mxu0 0
        %419 = vmatpush1.bf16.msra.mxu0 0
        %420 = vmatprep.subr.bf16.mxu0 0
        %421 = vmatpush1.bf16.msra.mxu0 %v389
        %422 = vmatprep.subr.bf16.mxu0 0
        %423 = vmatpush2.bf16.msra.mxu0 0
        %424 = vmatprep.subr.bf16.mxu0 0
        %425 = vmatpush2.bf16.msra.mxu0 0
        %426 = vmatprep.subr.bf16.mxu0 0
        %427 = vmatpush2.bf16.msra.mxu0 0
        %428 = vmatprep.subr.bf16.mxu0 0
        %429 = vmatpush2.bf16.msra.mxu0 0
        %430 = vmatprep.subr.bf16.mxu0 0
        %431 = vmatpush2.bf16.msra.mxu0 0
        %432 = vmatprep.subr.bf16.mxu0 0
        %433 = vmatpush2.bf16.msra.mxu0 0
        %434 = vmatprep.subr.bf16.mxu0 0
        %435 = vmatpush2.bf16.msra.mxu0 0
        %436 = vmatprep.subr.bf16.mxu0 0
        %437 = vmatpush2.bf16.msra.mxu0 0
        %438 = vmatprep.mubr.bf16.mxu0 0
        %439 = vmatmul.mubr.bf16.gmra.mxu0 %v392
        %v440 = vpop.f32.mrf.mxu0
        %v441 = vadd.f32 %v325, %v440
        %v442 = vpop.f32.mrf.mxu0
        %v443 = vpop.f32.mrf.mxu0
        %v444 = vadd.f32 %v328, %v443
        %v445 = vpop.f32.mrf.mxu0
        %446 = vmatprep.mubr.bf16.mxu0 0
        %447 = vmatmul.mubr.bf16.gmra.mxu0 %v395
        %v448 = vpop.f32.mrf.mxu0
        %v449 = vadd.f32 %v333, %v448
        %v450 = vpop.f32.mrf.mxu0
        %v451 = vpop.f32.mrf.mxu0
        %v452 = vadd.f32 %v336, %v451
        %v453 = vpop.f32.mrf.mxu0
        %454 = vmatprep.mubr.bf16.mxu0 0
        %455 = vmatmul.mubr.bf16.gmra.mxu0 %v398
        %v456 = vpop.f32.mrf.mxu0
        %v457 = vadd.f32 %v341, %v456
        %v458 = vpop.f32.mrf.mxu0
        %v459 = vpop.f32.mrf.mxu0
        %v460 = vadd.f32 %v344, %v459
        %v461 = vpop.f32.mrf.mxu0
        %462 = vmatprep.mubr.bf16.mxu0 0
        %463 = vmatmul.mubr.bf16.gmra.mxu0 %v401
        %v464 = vpop.f32.mrf.mxu0
        %v465 = vadd.f32 %v349, %v464
        %v466 = vpop.f32.mrf.mxu0
        %v467 = vpop.f32.mrf.mxu0
        %v468 = vadd.f32 %v352, %v467
        %v469 = vpop.f32.mrf.mxu0
        %470 = vmatprep.mubr.bf16.mxu0 0
        %471 = vmatmul.mubr.bf16.gmra.mxu0 %v404
        %v472 = vpop.f32.mrf.mxu0
        %v473 = vadd.f32 %v357, %v472
        %v474 = vpop.f32.mrf.mxu0
        %v475 = vpop.f32.mrf.mxu0
        %v476 = vpop.f32.mrf.mxu0
        %477 = vdwg.mxu0
        %s478 = scalar_lea.vmem %s2, 8
        %v479 = vld [vmem:[%s478] sm:$0xf]
        %v480 = vld [vmem:[%s478 + $0x4] sm:$0xf]
        %s481 = scalar_lea.vmem %s2, 24
        %v482 = vld [vmem:[%s481] sm:$0xf]
        %v483 = vld [vmem:[%s481 + $0x4] sm:$0xf]
        %v486 = vunpack.c.l.b16 %v482
        %v487 = vunpack.c.l.b16 %v483
        %v488 = vpack.c.b16 %v487, %v486
        %490 = vmatprep.subr.bf16.mxu0 0
        %491 = vmatpush1.bf16.msra.mxu0 0
        %492 = vmatprep.subr.bf16.mxu0 0
        %493 = vmatpush1.bf16.msra.mxu0 0
        %494 = vmatprep.subr.bf16.mxu0 0
        %495 = vmatpush1.bf16.msra.mxu0 0
        %496 = vmatprep.subr.bf16.mxu0 0
        %497 = vmatpush1.bf16.msra.mxu0 0
        %498 = vmatprep.subr.bf16.mxu0 0
        %499 = vmatpush1.bf16.msra.mxu0 0
        %500 = vmatprep.subr.bf16.mxu0 0
        %501 = vmatpush1.bf16.msra.mxu0 0
        %502 = vmatprep.subr.bf16.mxu0 0
        %503 = vmatpush1.bf16.msra.mxu0 0
        %504 = vmatprep.subr.bf16.mxu0 0
        %505 = vmatpush1.bf16.msra.mxu0 %v488
        %506 = vmatprep.subr.bf16.mxu0 0
        %507 = vmatpush2.bf16.msra.mxu0 0
        %508 = vmatprep.subr.bf16.mxu0 0
        %509 = vmatpush2.bf16.msra.mxu0 0
        %510 = vmatprep.subr.bf16.mxu0 0
        %511 = vmatpush2.bf16.msra.mxu0 0
        %512 = vmatprep.subr.bf16.mxu0 0
        %513 = vmatpush2.bf16.msra.mxu0 0
        %514 = vmatprep.subr.bf16.mxu0 0
        %515 = vmatpush2.bf16.msra.mxu0 0
        %516 = vmatprep.subr.bf16.mxu0 0
        %517 = vmatpush2.bf16.msra.mxu0 0
        %518 = vmatprep.subr.bf16.mxu0 0
        %519 = vmatpush2.bf16.msra.mxu0 0
        %520 = vmatprep.subr.bf16.mxu0 0
        %521 = vmatpush2.bf16.msra.mxu0 0
        %522 = vmatprep.mubr.bf16.mxu0 0
        %523 = vmatmul.mubr.bf16.gmra.mxu0 %v276
        %v524 = vpop.f32.mrf.mxu0
        %v525 = vadd.f32 0.0, %v524
        %v526 = vpop.f32.mrf.mxu0
        %v527 = vpop.f32.mrf.mxu0
        %v528 = vadd.f32 0.0, %v527
        %v529 = vpop.f32.mrf.mxu0
        %530 = vmatprep.mubr.bf16.mxu0 0
        %531 = vmatmul.mubr.bf16.gmra.mxu0 %v279
        %v532 = vpop.f32.mrf.mxu0
        %v533 = vadd.f32 0.0, %v532
        %v534 = vpop.f32.mrf.mxu0
        %v535 = vpop.f32.mrf.mxu0
        %v536 = vadd.f32 0.0, %v535
        %v537 = vpop.f32.mrf.mxu0
        %538 = vmatprep.mubr.bf16.mxu0 0
        %539 = vmatmul.mubr.bf16.gmra.mxu0 %v282
        %v540 = vpop.f32.mrf.mxu0
        %v541 = vadd.f32 0.0, %v540
        %v542 = vpop.f32.mrf.mxu0
        %v543 = vpop.f32.mrf.mxu0
        %v544 = vadd.f32 0.0, %v543
        %v545 = vpop.f32.mrf.mxu0
        %546 = vmatprep.mubr.bf16.mxu0 0
        %547 = vmatmul.mubr.bf16.gmra.mxu0 %v285
        %v548 = vpop.f32.mrf.mxu0
        %v549 = vadd.f32 0.0, %v548
        %v550 = vpop.f32.mrf.mxu0
        %v551 = vpop.f32.mrf.mxu0
        %v552 = vadd.f32 0.0, %v551
        %v553 = vpop.f32.mrf.mxu0
        %554 = vmatprep.mubr.bf16.mxu0 0
        %555 = vmatmul.mubr.bf16.gmra.mxu0 %v288
        %v556 = vpop.f32.mrf.mxu0
        %v557 = vadd.f32 0.0, %v556
        %v558 = vpop.f32.mrf.mxu0
        %v559 = vpop.f32.mrf.mxu0
        %v560 = vpop.f32.mrf.mxu0
        %561 = vdwg.mxu0
        %v564 = vunpack.c.l.b16 %v479
        %v565 = vunpack.c.l.b16 %v480
        %v566 = vpack.c.b16 %v565, %v564
        %568 = vmatprep.subr.bf16.mxu0 0
        %569 = vmatpush1.bf16.msra.mxu0 0
        %570 = vmatprep.subr.bf16.mxu0 0
        %571 = vmatpush1.bf16.msra.mxu0 0
        %572 = vmatprep.subr.bf16.mxu0 0
        %573 = vmatpush1.bf16.msra.mxu0 0
        %574 = vmatprep.subr.bf16.mxu0 0
        %575 = vmatpush1.bf16.msra.mxu0 0
        %576 = vmatprep.subr.bf16.mxu0 0
        %577 = vmatpush1.bf16.msra.mxu0 0
        %578 = vmatprep.subr.bf16.mxu0 0
        %579 = vmatpush1.bf16.msra.mxu0 0
        %580 = vmatprep.subr.bf16.mxu0 0
        %581 = vmatpush1.bf16.msra.mxu0 0
        %582 = vmatprep.subr.bf16.mxu0 0
        %583 = vmatpush1.bf16.msra.mxu0 %v566
        %584 = vmatprep.subr.bf16.mxu0 0
        %585 = vmatpush2.bf16.msra.mxu0 0
        %586 = vmatprep.subr.bf16.mxu0 0
        %587 = vmatpush2.bf16.msra.mxu0 0
        %588 = vmatprep.subr.bf16.mxu0 0
        %589 = vmatpush2.bf16.msra.mxu0 0
        %590 = vmatprep.subr.bf16.mxu0 0
        %591 = vmatpush2.bf16.msra.mxu0 0
        %592 = vmatprep.subr.bf16.mxu0 0
        %593 = vmatpush2.bf16.msra.mxu0 0
        %594 = vmatprep.subr.bf16.mxu0 0
        %595 = vmatpush2.bf16.msra.mxu0 0
        %596 = vmatprep.subr.bf16.mxu0 0
        %597 = vmatpush2.bf16.msra.mxu0 0
        %598 = vmatprep.subr.bf16.mxu0 0
        %599 = vmatpush2.bf16.msra.mxu0 0
        %600 = vmatprep.mubr.bf16.mxu0 0
        %601 = vmatmul.mubr.bf16.gmra.mxu0 %v392
        %v602 = vpop.f32.mrf.mxu0
        %v603 = vadd.f32 %v525, %v602
        %v604 = vpop.f32.mrf.mxu0
        %v605 = vpop.f32.mrf.mxu0
        %v606 = vadd.f32 %v528, %v605
        %v607 = vpop.f32.mrf.mxu0
        %608 = vmatprep.mubr.bf16.mxu0 0
        %609 = vmatmul.mubr.bf16.gmra.mxu0 %v395
        %v610 = vpop.f32.mrf.mxu0
        %v611 = vadd.f32 %v533, %v610
        %v612 = vpop.f32.mrf.mxu0
        %v613 = vpop.f32.mrf.mxu0
        %v614 = vadd.f32 %v536, %v613
        %v615 = vpop.f32.mrf.mxu0
        %616 = vmatprep.mubr.bf16.mxu0 0
        %617 = vmatmul.mubr.bf16.gmra.mxu0 %v398
        %v618 = vpop.f32.mrf.mxu0
        %v619 = vadd.f32 %v541, %v618
        %v620 = vpop.f32.mrf.mxu0
        %v621 = vpop.f32.mrf.mxu0
        %v622 = vadd.f32 %v544, %v621
        %v623 = vpop.f32.mrf.mxu0
        %624 = vmatprep.mubr.bf16.mxu0 0
        %625 = vmatmul.mubr.bf16.gmra.mxu0 %v401
        %v626 = vpop.f32.mrf.mxu0
        %v627 = vadd.f32 %v549, %v626
        %v628 = vpop.f32.mrf.mxu0
        %v629 = vpop.f32.mrf.mxu0
        %v630 = vadd.f32 %v552, %v629
        %v631 = vpop.f32.mrf.mxu0
        %632 = vmatprep.mubr.bf16.mxu0 0
        %633 = vmatmul.mubr.bf16.gmra.mxu0 %v404
        %v634 = vpop.f32.mrf.mxu0
        %v635 = vadd.f32 %v557, %v634
        %v636 = vpop.f32.mrf.mxu0
        %v637 = vpop.f32.mrf.mxu0
        %v638 = vpop.f32.mrf.mxu0
        %639 = vdwg.mxu0
        %v640 = vrot.slane %v603, 1
        %v641 = vrot.slane %v606, 1
        %v642 = vrot.slane %v611, 1
        %v643 = vrot.slane %v614, 1
        %v644 = vrot.slane %v619, 1
        %v645 = vrot.slane %v622, 1
        %v646 = vrot.slane %v627, 1
        %v647 = vrot.slane %v630, 1
        %v648 = vrot.slane %v635, 1
        %v649 = vlaneseq
        %v650 = vshrl.u32 %v649, 7
        %vm651 = vcmp.lt.s32.totalorder %v650, 7
        %v652 = vsel %vm651, %v647, %v648
        %v653 = vsel %vm651, %v646, %v647
        %v654 = vsel %vm651, %v645, %v646
        %v655 = vsel %vm651, %v644, %v645
        %v656 = vsel %vm651, %v643, %v644
        %v657 = vsel %vm651, %v642, %v643
        %v658 = vsel %vm651, %v641, %v642
        %v659 = vsel %vm651, %v640, %v641
        %v660 = vsel %vm651, %v648, %v640
        %v661 = vadd.f32 %v441, %v659
        %v662 = vadd.f32 %v444, %v658
        %v663 = vadd.f32 %v449, %v657
        %v664 = vadd.f32 %v452, %v656
        %v665 = vadd.f32 %v457, %v655
        %v666 = vadd.f32 %v460, %v654
        %v667 = vadd.f32 %v465, %v653
        %v668 = vadd.f32 %v468, %v652
        %v669 = vadd.f32 %v473, %v660
        %v670 = vld [vmem:[%s3] sm:$0x1]
        %v671 = vlaneseq
        %v672 = vshrl.u32 %v671, 7
        %v673 = vsub.s32 0, %v672
        %v674 = vrot.slane %v670, %v673
        %v675 = vadd.f32 %v661, %v674
        %v676 = vadd.f32 %v662, %v674
        %v677 = vadd.f32 %v663, %v674
        %v678 = vadd.f32 %v664, %v674
        %v679 = vadd.f32 %v665, %v674
        %v680 = vadd.f32 %v666, %v674
        %v681 = vadd.f32 %v667, %v674
        %v682 = vadd.f32 %v668, %v674
        %v683 = vadd.f32 %v669, %v674
        %684 = vadd.xlane.f32.xlu0 %v675
        %v685 = vpop.xlane.xlu0 %684
        %686 = vadd.xlane.f32.xlu0 %v676
        %v687 = vpop.xlane.xlu0 %686
        %688 = vadd.xlane.f32.xlu0 %v677
        %v689 = vpop.xlane.xlu0 %688
        %690 = vadd.xlane.f32.xlu0 %v678
        %v691 = vpop.xlane.xlu0 %690
        %692 = vadd.xlane.f32.xlu0 %v679
        %v693 = vpop.xlane.xlu0 %692
        %694 = vadd.xlane.f32.xlu0 %v680
        %v695 = vpop.xlane.xlu0 %694
        %696 = vadd.xlane.f32.xlu0 %v681
        %v697 = vpop.xlane.xlu0 %696
        %698 = vadd.xlane.f32.xlu0 %v682
        %v699 = vpop.xlane.xlu0 %698
        %700 = vadd.xlane.f32.xlu0 %v683
        %v701 = vpop.xlane.xlu0 %700
        %v702 = vmul.f32 %v685, 0.125
        %v703 = vmul.f32 %v687, 0.125
        %v704 = vmul.f32 %v689, 0.125
        %v705 = vmul.f32 %v691, 0.125
        %v706 = vmul.f32 %v693, 0.125
        %v707 = vmul.f32 %v695, 0.125
        %v708 = vmul.f32 %v697, 0.125
        %v709 = vmul.f32 %v699, 0.125
        %v710 = vmul.f32 %v701, 0.125
        %v711 = vmul.f32 %v675, %v675
        %v712 = vmul.f32 %v676, %v676
        %v713 = vmul.f32 %v677, %v677
        %v714 = vmul.f32 %v678, %v678
        %v715 = vmul.f32 %v679, %v679
        %v716 = vmul.f32 %v680, %v680
        %v717 = vmul.f32 %v681, %v681
        %v718 = vmul.f32 %v682, %v682
        %v719 = vmul.f32 %v683, %v683
        %720 = vadd.xlane.f32.xlu0 %v711
        %v721 = vpop.xlane.xlu0 %720
        %722 = vadd.xlane.f32.xlu0 %v712
        %v723 = vpop.xlane.xlu0 %722
        %724 = vadd.xlane.f32.xlu0 %v713
        %v725 = vpop.xlane.xlu0 %724
        %726 = vadd.xlane.f32.xlu0 %v714
        %v727 = vpop.xlane.xlu0 %726
        %728 = vadd.xlane.f32.xlu0 %v715
        %v729 = vpop.xlane.xlu0 %728
        %730 = vadd.xlane.f32.xlu0 %v716
        %v731 = vpop.xlane.xlu0 %730
        %732 = vadd.xlane.f32.xlu0 %v717
        %v733 = vpop.xlane.xlu0 %732
        %734 = vadd.xlane.f32.xlu0 %v718
        %v735 = vpop.xlane.xlu0 %734
        %736 = vadd.xlane.f32.xlu0 %v719
        %v737 = vpop.xlane.xlu0 %736
        %v738 = vmul.f32 %v721, 0.125
        %v739 = vmul.f32 %v723, 0.125
        %v740 = vmul.f32 %v725, 0.125
        %v741 = vmul.f32 %v727, 0.125
        %v742 = vmul.f32 %v729, 0.125
        %v743 = vmul.f32 %v731, 0.125
        %v744 = vmul.f32 %v733, 0.125
        %v745 = vmul.f32 %v735, 0.125
        %v746 = vmul.f32 %v737, 0.125
        %v747 = vmul.f32 %v702, %v702
        %v748 = vmul.f32 %v703, %v703
        %v749 = vmul.f32 %v704, %v704
        %v750 = vmul.f32 %v705, %v705
        %v751 = vmul.f32 %v706, %v706
        %v752 = vmul.f32 %v707, %v707
        %v753 = vmul.f32 %v708, %v708
        %v754 = vmul.f32 %v709, %v709
        %v755 = vmul.f32 %v710, %v710
        %v756 = vsub.f32 %v738, %v747
        %v757 = vsub.f32 %v739, %v748
        %v758 = vsub.f32 %v740, %v749
        %v759 = vsub.f32 %v741, %v750
        %v760 = vsub.f32 %v742, %v751
        %v761 = vsub.f32 %v743, %v752
        %v762 = vsub.f32 %v744, %v753
        %v763 = vsub.f32 %v745, %v754
        %v764 = vsub.f32 %v746, %v755
        %v765 = vadd.f32 %v756, 1e-05
        %v766 = vadd.f32 %v757, 1e-05
        %v767 = vadd.f32 %v758, 1e-05
        %v768 = vadd.f32 %v759, 1e-05
        %v769 = vadd.f32 %v760, 1e-05
        %v770 = vadd.f32 %v761, 1e-05
        %v771 = vadd.f32 %v762, 1e-05
        %v772 = vadd.f32 %v763, 1e-05
        %v773 = vadd.f32 %v764, 1e-05
        %v774 = vrsqrt.pop %v765
        %v775 = vrsqrt.pop %v766
        %v776 = vrsqrt.pop %v767
        %v777 = vrsqrt.pop %v768
        %v778 = vrsqrt.pop %v769
        %v779 = vrsqrt.pop %v770
        %v780 = vrsqrt.pop %v771
        %v781 = vrsqrt.pop %v772
        %v782 = vrsqrt.pop %v773
        %v783 = vld [vmem:[%s3 + $0x1] sm:$0x1]
        %v784 = vlaneseq
        %v785 = vshrl.u32 %v784, 7
        %v786 = vsub.s32 0, %v785
        %v787 = vrot.slane %v783, %v786
        %v788 = vmul.f32 %v774, %v787
        %v789 = vmul.f32 %v775, %v787
        %v790 = vmul.f32 %v776, %v787
        %v791 = vmul.f32 %v777, %v787
        %v792 = vmul.f32 %v778, %v787
        %v793 = vmul.f32 %v779, %v787
        %v794 = vmul.f32 %v780, %v787
        %v795 = vmul.f32 %v781, %v787
        %v796 = vmul.f32 %v782, %v787
        %v797 = vmul.f32 %v675, %v788
        %v798 = vmul.f32 %v676, %v789
        %v799 = vmul.f32 %v677, %v790
        %v800 = vmul.f32 %v678, %v791
        %v801 = vmul.f32 %v679, %v792
        %v802 = vmul.f32 %v680, %v793
        %v803 = vmul.f32 %v681, %v794
        %v804 = vmul.f32 %v682, %v795
        %v805 = vmul.f32 %v683, %v796
        %v806 = vld [vmem:[%s3 + $0x2] sm:$0x1]
        %v807 = vmul.f32 %v702, %v788
        %v808 = vmul.f32 %v703, %v789
        %v809 = vmul.f32 %v704, %v790
        %v810 = vmul.f32 %v705, %v791
        %v811 = vmul.f32 %v706, %v792
        %v812 = vmul.f32 %v707, %v793
        %v813 = vmul.f32 %v708, %v794
        %v814 = vmul.f32 %v709, %v795
        %v815 = vmul.f32 %v710, %v796
        %v816 = vlaneseq
        %v817 = vshrl.u32 %v816, 7
        %v818 = vsub.s32 0, %v817
        %v819 = vrot.slane %v806, %v818
        %v820 = vsub.f32 %v819, %v807
        %v821 = vsub.f32 %v819, %v808
        %v822 = vsub.f32 %v819, %v809
        %v823 = vsub.f32 %v819, %v810
        %v824 = vsub.f32 %v819, %v811
        %v825 = vsub.f32 %v819, %v812
        %v826 = vsub.f32 %v819, %v813
        %v827 = vsub.f32 %v819, %v814
        %v828 = vsub.f32 %v819, %v815
        %v829 = vadd.f32 %v797, %v820
        %v830 = vadd.f32 %v798, %v821
        %v831 = vadd.f32 %v799, %v822
        %v832 = vadd.f32 %v800, %v823
        %v833 = vadd.f32 %v801, %v824
        %v834 = vadd.f32 %v802, %v825
        %v835 = vadd.f32 %v803, %v826
        %v836 = vadd.f32 %v804, %v827
        %v837 = vadd.f32 %v805, %v828
        %838 = vst [vmem:[%s207] sm:$0xff] %v829
        %839 = vst [vmem:[%s207 + $0x8] sm:$0xff] %v830
        %840 = vst [vmem:[%s207 + $0x10] sm:$0xff] %v831
        %841 = vst [vmem:[%s207 + $0x18] sm:$0xff] %v832
        %842 = vst [vmem:[%s207 + $0x20] sm:$0xff] %v833
        %843 = vst [vmem:[%s207 + $0x28] sm:$0xff] %v834
        %844 = vst [vmem:[%s207 + $0x30] sm:$0xff] %v835
        %845 = vst [vmem:[%s207 + $0x38] sm:$0xff] %v836
        %846 = vst [vmem:[%s207 + $0x40] sm:$0xff] %v837
        %s847 = sand.u32 %s120, 1
        %s848 = scalar_lea.sflag [#allocation3], %s847
        %s849 = sand.u32 %s120, 1
        %s850 = smul.addr %s849, 72
        %s851 = scalar_lea.vmem [#allocation2], %s850
        // Predicated region
        $region37: #{tpu_custom_call.1} parent=35 // pred_check
          %p852 = pneg %p130
        $region38: #{tpu_custom_call.1} parent=35 // pred_check_branch
          %854 = sbr.rel (%p852) target = $region40
        $region39: #{tpu_custom_call.1} parent=35 // pred_region
          %s855 = smul.u32 9, %s18
          %s857 = ssub.s32 1152, 1152
          %858 = vsyncadd %s848, %s857
          %s859 = smul.addr %s855, 128
          %s860 = scalar_lea.hbm %s4, %s859
          %s861 = sshll.u32 %s851, 4
          %s862 = int_to_ptr.vmem [resolvable:$true] %s861
          %867 = dma.vmem_to_hbm [thread:$0]  %s862, 1152, %s860, %s848, 128, 128, 8
        $region40: #{tpu_custom_call.1} parent=35 // pred_fallthru
          _
      $region36: #{tpu_custom_call.1} parent=5 // pred_fallthru
        _
      %p868 = scmp.le.s32.totalorder 2, %s13
      // Predicated region
      $region41: #{tpu_custom_call.1} parent=5 // pred_check
        %p869 = pneg %p868
      $region42: #{tpu_custom_call.1} parent=5 // pred_check_branch
        %871 = sbr.rel (%p869) target = $region44
      $region43: #{tpu_custom_call.1} parent=5 // pred_region
        %s872 = ssub.s32 %s13, 2
        // Predicated region
        $region45: #{tpu_custom_call.1} parent=43 // pred_check
          %p873 = pneg %p136
        $region46: #{tpu_custom_call.1} parent=43 // pred_check_branch
          %875 = sbr.rel (%p873) target = $region48
        $region47: #{tpu_custom_call.1} parent=43 // pred_region
          %s876 = sand.u32 %s121, 1
          %s877 = scalar_lea.sflag [#allocation3], %s876
          %s878 = sand.u32 %s121, 1
          %s879 = smul.addr %s878, 72
          %s880 = scalar_lea.vmem [#allocation2], %s879
          %881 = dma.done %s877, 1152
        $region48: #{tpu_custom_call.1} parent=43 // pred_fallthru
          _
      $region44: #{tpu_custom_call.1} parent=5 // pred_fallthru
        _
    $region6: #{tpu_custom_call.1} parent=1 // loop_footer
      %s17 = sadd.s32 1, %s13
    $region7: #{tpu_custom_call.1} parent=1 // loop_footer_branch
      %12 = sbr.rel target = $region3
    $region8: #{tpu_custom_call.1} parent=1 // loop_exit
      _
    %882 = vsyncpa [#allocation3], 1
    %s883 = scalar_lea.sflag [#allocation3], 1
    %884 = vsyncpa %s883, 1

</llo_original>
